<compile_context>
chip_gen: v5e
topology: v5e:2x2
jax: 0.10.0
libtpu: 0.0.40
codegen_flags: <defaults>
</compile_context>

<pallas_src>
import math

import jax
import jax.numpy as jnp
from jax.experimental import pallas as pl
from jax.experimental.pallas import tpu as pltpu


# bf16 is MXU-native on v5e/v6e/v7x; accumulation stays f32 inside the kernels.
_COMPUTE_DTYPE = jnp.bfloat16


def _tpu_vmem_capacity_bytes():
    """Physical VMEM per TensorCore; conservative 64 MiB (v7x-sized) fallback."""
    try:
        return int(pltpu.get_tpu_info().vmem_capacity_bytes)
    except Exception:
        return 64 * 1024 * 1024


_VMEM_CAPACITY = _tpu_vmem_capacity_bytes()
if _VMEM_CAPACITY >= 96 * 1024 * 1024:
    # v5e / v6e: 128 MiB physical VMEM per TensorCore.  Use it: larger q tiles
    # cut how often K/V are re-streamed from HBM (v5e's ~820 GB/s benefits the
    # most) and amortize the ~0.35 us per-grid-step overhead.
    _VMEM_LIMIT_BYTES = 100 * 1024 * 1024
    _ATTN_TQ_PREF, _ATTN_TKV_PREF = 512, 512
    _SMALL_VMEM = False
else:
    # v7x: 64 MiB physical VMEM per TensorCore.  The (H, tq, tkv) f32
    # score/prob temporaries scale fast, so keep smaller attention tiles and a
    # 48 MiB scoped cap.
    _VMEM_LIMIT_BYTES = 48 * 1024 * 1024
    _ATTN_TQ_PREF, _ATTN_TKV_PREF = 256, 256
    _SMALL_VMEM = True


def _fit_tile(dim, preferred):
    """Largest lane/MXU-friendly tile (multiple of 128) <= `preferred` that
    divides `dim`; falls back to the full dimension (always a legal block)."""
    for cand in (1024, 768, 640, 512, 384, 256, 128):
        if cand <= preferred and cand <= dim and dim % cand == 0:
            return cand
    # TODO(synk): for large dims not divisible by 128, pad in the wrapper (with
    # masked tails) instead of one un-pipelined full-dimension block.
    return dim


# ---------------------------------------------------------------------------
# Tiled matmul + bias kernel:  y = x @ w + b
# ---------------------------------------------------------------------------

def _linear_bias_kernel(x_ref, w_ref, b_ref, o_ref, acc_ref):
    k = pl.program_id(2)

    @pl.when(k == 0)
    def _():
        acc_ref[...] = jnp.zeros_like(acc_ref)

    acc_ref[...] += jnp.dot(x_ref[...], w_ref[...],
                            preferred_element_type=jnp.float32)

    @pl.when(k == pl.num_programs(2) - 1)
    def _():
        # Bias is added exactly once, after the full K reduction.
        o_ref[...] = (acc_ref[...] + b_ref[...]).astype(o_ref.dtype)


def tiled_linear(x, w, b, *, out_dtype=jnp.float32,
                 tm_pref=512, tn_pref=512, tk_pref=1024):
    """x: (M, K) bf16, w: (K, N) bf16, b: (N,) f32  ->  (M, N) out_dtype."""
    M, K = x.shape
    _, N = w.shape
    tm, tn, tk = _fit_tile(M, tm_pref), _fit_tile(N, tn_pref), _fit_tile(K, tk_pref)
    grid = (M // tm, N // tn, K // tk)
    b2 = b.reshape(1, N).astype(jnp.float32)

    cost = pl.CostEstimate(
        flops=2 * M * N * K,
        transcendentals=0,
        bytes_accessed=(M * K * x.dtype.itemsize + K * N * w.dtype.itemsize
                        + N * 4 + M * N * jnp.dtype(out_dtype).itemsize),
    )
    return pl.pallas_call(
        _linear_bias_kernel,
        out_shape=jax.ShapeDtypeStruct((M, N), out_dtype),
        grid_spec=pltpu.PrefetchScalarGridSpec(
            num_scalar_prefetch=0,
            grid=grid,
            in_specs=[
                pl.BlockSpec((tm, tk), lambda i, j, k: (i, k)),
                pl.BlockSpec((tk, tn), lambda i, j, k: (k, j)),
                pl.BlockSpec((1, tn), lambda i, j, k: (0, j)),
            ],
            out_specs=pl.BlockSpec((tm, tn), lambda i, j, k: (i, j)),
            scratch_shapes=[pltpu.VMEM((tm, tn), jnp.float32)],
        ),
        compiler_params=pltpu.CompilerParams(
            dimension_semantics=("parallel", "parallel", "arbitrary"),
            vmem_limit_bytes=_VMEM_LIMIT_BYTES,
        ),
        cost_estimate=cost,
    )(x, w, b2)


# ---------------------------------------------------------------------------
# Flash-style multi-head attention kernel (all heads per grid step)
# ---------------------------------------------------------------------------

def _flash_attn_kernel(q_ref, k_ref, v_ref, o_ref, q_scr, m_scr, l_scr, acc_scr):
    kv = pl.program_id(2)
    H, tq, Dk = acc_scr.shape  # static

    @pl.when(kv == 0)
    def _():
        m_scr[...] = jnp.full_like(m_scr, -jnp.inf)
        l_scr[...] = jnp.zeros_like(l_scr)
        acc_scr[...] = jnp.zeros_like(acc_scr)
        # Hoist the q-block relayout out of the kv loop: the q block is
        # constant along the kv axis, and 1/sqrt(d_k) is already folded into
        # W_q / b_q at param-prep time (no per-step VPU scale).
        q_scr[...] = jnp.swapaxes(q_ref[...], 0, 1)          # (H, tq, Dk) bf16

    k = jnp.swapaxes(k_ref[...], 0, 1)                        # (H, tkv, Dk) bf16
    v = jnp.swapaxes(v_ref[...], 0, 1)                        # (H, tkv, Dk) bf16

    # bf16 MXU matmuls, f32 accumulation; contract last dims (no explicit .T).
    s = jnp.einsum("hqd,hkd->hqk", q_scr[...], k,
                   preferred_element_type=jnp.float32)        # (H, tq, tkv) f32

    # Online softmax (f32 math).
    m_prev = m_scr[...]
    m_new = jnp.maximum(m_prev, s.max(axis=-1, keepdims=True))
    alpha = jnp.exp(m_prev - m_new)
    # TODO(synk): on v6e/v7x a bf16 exp here would unload the single EUP slot;
    #             kept f32 so the same code path is exact-safe on v5e too.
    p = jnp.exp(s - m_new)
    l_scr[...] = alpha * l_scr[...] + p.sum(axis=-1, keepdims=True)
    acc_scr[...] = alpha * acc_scr[...] + jnp.einsum(
        "hqk,hkd->hqd", p.astype(v.dtype), v,
        preferred_element_type=jnp.float32)
    m_scr[...] = m_new

    @pl.when(kv == pl.num_programs(2) - 1)
    def _():
        out = acc_scr[...] * pl.reciprocal(l_scr[...], approx=True)  # (H,tq,Dk) f32
        # Lane-dense store: write (tq, H*Dk) so the trailing dim is a multiple
        # of 128 even when d_k < 128 (full vst instead of masked vst.msk), and
        # the result is already in combine_heads / d_model order.
        o_ref[...] = jnp.swapaxes(out, 0, 1).reshape(tq, H * Dk).astype(o_ref.dtype)


def flash_attention(q_arr, k_arr, v_arr, q_sel, k_sel, v_sel, *,
                    tq_pref=_ATTN_TQ_PREF, tkv_pref=_ATTN_TKV_PREF):
    """q/k/v_arr: (B, S, P, H, d_k) bf16 packed projections.  *_sel picks the
    packed-projection index P (0/1/2 for a fused QKV matmul, 0/1 for fused KV,
    else 0).  Returns (B, Sq, H*d_k) bf16 (already combine_heads order)."""
    B, Sq, _, H, Dk = q_arr.shape
    _, Skv, _, _, _ = k_arr.shape
    D = H * Dk
    tq, tkv = _fit_tile(Sq, tq_pref), _fit_tile(Skv, tkv_pref)
    if _SMALL_VMEM and B == 1 and Sq == tq and tq % 256 == 0:
        # v7x has 2 TensorCores; keep >=2 iterations on the parallel grid axes
        # so one core is not idled when B == 1.
        tq //= 2
    grid = (B, Sq // tq, Skv // tkv)

    def q_idx(sel):
        return lambda b, qi, ki: (b, qi, sel, 0, 0)

    def kv_idx(sel):
        return lambda b, qi, ki: (b, ki, sel, 0, 0)

    itemsize = jnp.dtype(_COMPUTE_DTYPE).itemsize
    n_q_tiles = Sq // tq
    cost = pl.CostEstimate(
        flops=4 * B * H * Sq * Skv * Dk,
        transcendentals=B * H * Sq * Skv,
        bytes_accessed=(B * Sq * D * itemsize                      # Q read
                        + 2 * B * Skv * D * itemsize * n_q_tiles   # K,V re-streamed per q tile
                        + B * Sq * D * itemsize),                  # bf16 output write
    )
    return pl.pallas_call(
        _flash_attn_kernel,
        out_shape=jax.ShapeDtypeStruct((B, Sq, D), jnp.bfloat16),
        grid_spec=pltpu.PrefetchScalarGridSpec(
            num_scalar_prefetch=0,
            grid=grid,
            in_specs=[
                pl.BlockSpec((None, tq, None, H, Dk), q_idx(q_sel)),
                # TODO(synk): on v5e, pipeline_mode=pl.Buffered(3) on K/V if
                #             xprof shows exposed K/V DMA.
                pl.BlockSpec((None, tkv, None, H, Dk), kv_idx(k_sel)),
                pl.BlockSpec((None, tkv, None, H, Dk), kv_idx(v_sel)),
            ],
            out_specs=pl.BlockSpec((None, tq, D), lambda b, qi, ki: (b, qi, 0)),
            scratch_shapes=[
                pltpu.VMEM((H, tq, Dk), _COMPUTE_DTYPE),   # hoisted q relayout
                pltpu.VMEM((H, tq, 1), jnp.float32),       # running max
                pltpu.VMEM((H, tq, 1), jnp.float32),       # running sum
                pltpu.VMEM((H, tq, Dk), jnp.float32),      # output accumulator
            ],
        ),
        compiler_params=pltpu.CompilerParams(
            dimension_semantics=("parallel", "parallel", "arbitrary"),
            vmem_limit_bytes=_VMEM_LIMIT_BYTES,
        ),
        cost_estimate=cost,
    )(q_arr, k_arr, v_arr)


# ---------------------------------------------------------------------------
# Parameters and forward pass
# ---------------------------------------------------------------------------

def init_mha_params(key, d_model):
    """PyTorch nn.Linear-style init U(-1/sqrt(d_model), 1/sqrt(d_model)); f32.
    Weights are stored already transposed to (d_in, d_out) so y = x @ W + b."""
    bound = 1.0 / math.sqrt(d_model)
    keys = jax.random.split(key, 8)
    params = {}
    for i, name in enumerate(["q", "k", "v", "o"]):
        params[f"W_{name}"] = jax.random.uniform(
            keys[2 * i], (d_model, d_model), jnp.float32, -bound, bound)
        params[f"b_{name}"] = jax.random.uniform(
            keys[2 * i + 1], (d_model,), jnp.float32, -bound, bound)
    return params


def prepare_mha_params(params, num_heads):
    """One-time packing/casting into kernel-friendly form: fused QKV and KV
    weights, 1/sqrt(d_k) folded into W_q/b_q in f32 (before the bf16 cast),
    bf16 weights, f32 biases."""
    cd = _COMPUTE_DTYPE
    d_model = params["W_q"].shape[0]
    d_k = d_model // num_heads
    scale = 1.0 / math.sqrt(d_k)
    w_q_s = params["W_q"] * scale
    b_q_s = params["b_q"] * scale
    return {
        "w_qkv": jnp.concatenate(
            [w_q_s, params["W_k"], params["W_v"]], axis=1).astype(cd),
        "b_qkv": jnp.concatenate(
            [b_q_s, params["b_k"], params["b_v"]], axis=0),
        "w_kv": jnp.concatenate(
            [params["W_k"], params["W_v"]], axis=1).astype(cd),
        "b_kv": jnp.concatenate([params["b_k"], params["b_v"]], axis=0),
        "w_q": w_q_s.astype(cd), "b_q": b_q_s,
        "w_k": params["W_k"].astype(cd), "b_k": params["b_k"],
        "w_v": params["W_v"].astype(cd), "b_v": params["b_v"],
        "w_o": params["W_o"].astype(cd), "b_o": params["b_o"],
    }


def mha_forward(prepared, Q, K, V, num_heads):
    B, Sq, D = Q.shape
    _, Skv, _ = K.shape
    d_k = D // num_heads
    cd = _COMPUTE_DTYPE

    if (Q is K) and (K is V):
        # Self-attention fast path: one fused QKV matmul (x read from HBM
        # once); the packed output feeds the attention kernel directly via
        # BlockSpec index_maps (no splits, no transposes).
        x2 = Q.reshape(B * Sq, D).astype(cd)
        qkv = tiled_linear(x2, prepared["w_qkv"], prepared["b_qkv"],
                           out_dtype=cd)                      # (B*S, 3*D)
        packed = qkv.reshape(B, Sq, 3, num_heads, d_k)        # free reshape
        attn = flash_attention(packed, packed, packed, 0, 1, 2)
    else:
        q = tiled_linear(Q.reshape(B * Sq, D).astype(cd),
                         prepared["w_q"], prepared["b_q"], out_dtype=cd)
        q = q.reshape(B, Sq, 1, num_heads, d_k)
        if K is V:
            # Encoder-decoder cross-attention: fuse the K and V projections so
            # the memory activations are read from HBM once.
            kv = tiled_linear(K.reshape(B * Skv, D).astype(cd),
                              prepared["w_kv"], prepared["b_kv"], out_dtype=cd)
            kv = kv.reshape(B, Skv, 2, num_heads, d_k)
            attn = flash_attention(q, kv, kv, 0, 0, 1)
        else:
            k = tiled_linear(K.reshape(B * Skv, D).astype(cd),
                             prepared["w_k"], prepared["b_k"], out_dtype=cd)
            v = tiled_linear(V.reshape(B * Skv, D).astype(cd),
                             prepared["w_v"], prepared["b_v"], out_dtype=cd)
            k = k.reshape(B, Skv, 1, num_heads, d_k)
            v = v.reshape(B, Skv, 1, num_heads, d_k)
            attn = flash_attention(q, k, v, 0, 0, 0)

    # attn is already (B, Sq, d_model) in combine_heads order (lane-dense
    # output from the attention kernel): no transpose, only a free reshape.
    out = tiled_linear(attn.reshape(B * Sq, D), prepared["w_o"], prepared["b_o"],
                       out_dtype=jnp.float32)
    return out.reshape(B, Sq, D)


# Pure-f32 JAX reference mirroring the PyTorch module exactly.
def mha_reference(params, Q, K, V, num_heads):
    B, Sq, D = Q.shape
    _, Skv, _ = K.shape
    d_k = D // num_heads

    def split(x, s):
        return x.reshape(B, s, num_heads, d_k).transpose(0, 2, 1, 3)

    q = split(Q @ params["W_q"] + params["b_q"], Sq)
    k = split(K @ params["W_k"] + params["b_k"], Skv)
    v = split(V @ params["W_v"] + params["b_v"], Skv)
    scores = jnp.einsum("bhqd,bhkd->bhqk", q, k) / math.sqrt(d_k)
    p = jax.nn.softmax(scores, axis=-1)
    attn = jnp.einsum("bhqk,bhkd->bhqd", p, v)
    out = attn.transpose(0, 2, 1, 3).reshape(B, Sq, D)
    return out @ params["W_o"] + params["b_o"]


if __name__ == "__main__":
    batch, seq, seq_kv, d_model, num_heads = 2, 8, 16, 32, 4

    key = jax.random.PRNGKey(0)
    k_params, k_x, k_q, k_k, k_v, k_m = jax.random.split(key, 6)

    params = init_mha_params(k_params, d_model)
    prepared = prepare_mha_params(params, num_heads)

    # 1) Self-attention (fused-QKV + packed-attention fast path).
    X = jax.random.normal(k_x, (batch, seq, d_model), jnp.float32)
    out_self = jax.block_until_ready(mha_forward(prepared, X, X, X, num_heads))
    ref_self = mha_reference(params, X, X, X, num_heads)

    # 2) Encoder-decoder cross-attention (K is V -> fused KV path, Sq != Skv).
    Qx = jax.random.normal(k_q, (batch, seq, d_model), jnp.float32)
    Mem = jax.random.normal(k_m, (batch, seq_kv, d_model), jnp.float32)
    out_encdec = jax.block_until_ready(mha_forward(prepared, Qx, Mem, Mem, num_heads))
    ref_encdec = mha_reference(params, Qx, Mem, Mem, num_heads)

    # 3) Fully distinct Q, K, V (per-projection path).
    Kx = jax.random.normal(k_k, (batch, seq, d_model), jnp.float32)
    Vx = jax.random.normal(k_v, (batch, seq, d_model), jnp.float32)
    out_cross = jax.block_until_ready(mha_forward(prepared, Qx, Kx, Vx, num_heads))
    ref_cross = mha_reference(params, Qx, Kx, Vx, num_heads)

    assert out_self.shape == (batch, seq, d_model)
    assert out_encdec.shape == (batch, seq, d_model)
    assert out_cross.shape == (batch, seq, d_model)
    assert out_self.dtype == jnp.float32
    # Kernels use bf16 MXU inputs with f32 accumulation (per perf guidance);
    # the tolerance vs. the pure-f32 reference covers bf16 quantization noise
    # while still catching structural/kernel bugs (which would be O(0.1+)).
    assert jnp.allclose(out_self, ref_self, rtol=5e-2, atol=5e-2), \
        "self-attention mismatch vs reference"
    assert jnp.allclose(out_encdec, ref_encdec, rtol=5e-2, atol=5e-2), \
        "encoder-decoder attention mismatch vs reference"
    assert jnp.allclose(out_cross, ref_cross, rtol=5e-2, atol=5e-2), \
        "cross-attention mismatch vs reference"

    print("KERNEL_OK")
</pallas_src>

<mosaic_0001>
module attributes {stable_mosaic.version = 11 : i64} {
  func.func @_linear_bias_kernel(%arg0: i32, %arg1: i32, %arg2: i32, %arg3: memref<16x32xbf16, #tpu.memory_space<vmem>>, %arg4: memref<32x96xbf16, #tpu.memory_space<vmem>>, %arg5: memref<1x96xf32, #tpu.memory_space<vmem>>, %arg6: memref<16x96xbf16, #tpu.memory_space<vmem>>, %arg7: memref<16x96xf32, #tpu.memory_space<vmem>>) attributes {dimension_semantics = [#tpu.dimension_semantics<parallel>, #tpu.dimension_semantics<parallel>, #tpu.dimension_semantics<arbitrary>], iteration_bounds = array<i64: 1, 1, 1>, scalar_prefetch = 0 : i64, scratch_operands = 1 : i64, tpu.core_type = #tpu.core_type<tc>, window_params = [{transform_indices = @transform_0, window_bounds = array<i64: 16, 32>}, {transform_indices = @transform_1, window_bounds = array<i64: 32, 96>}, {transform_indices = @transform_2, window_bounds = array<i64: 1, 96>}, {transform_indices = @transform_3, window_bounds = array<i64: 16, 96>}]} {
    %c0_i32 = arith.constant 0 : i32
    %0 = arith.cmpi eq, %arg2, %c0_i32 : i32
    %1 = arith.extui %0 : i1 to i32
    %c0_i32_0 = arith.constant 0 : i32
    %2 = arith.cmpi ne, %1, %c0_i32_0 : i32
    scf.if %2 {
      %cst_10 = arith.constant 0.000000e+00 : f32
      %12 = vector.broadcast %cst_10 : f32 to vector<16x96xf32>
      %c0_11 = arith.constant 0 : index
      %c0_12 = arith.constant 0 : index
      %13 = vector.load %arg7[%c0_11, %c0_12] : memref<16x96xf32, #tpu.memory_space<vmem>>, vector<16x96xf32>
      tpu.vector_store %arg7[%c0_11, %c0_12], %12 {strides = array<i32>} : memref<16x96xf32, #tpu.memory_space<vmem>>, vector<16x96xf32>,
    } else {
    }
    %c0 = arith.constant 0 : index
    %c0_1 = arith.constant 0 : index
    %3 = vector.load %arg7[%c0, %c0_1] : memref<16x96xf32, #tpu.memory_space<vmem>>, vector<16x96xf32>
    %c0_2 = arith.constant 0 : index
    %c0_3 = arith.constant 0 : index
    %4 = vector.load %arg3[%c0_2, %c0_3] : memref<16x32xbf16, #tpu.memory_space<vmem>>, vector<16x32xbf16>
    %c0_4 = arith.constant 0 : index
    %c0_5 = arith.constant 0 : index
    %5 = vector.load %arg4[%c0_4, %c0_5] : memref<32x96xbf16, #tpu.memory_space<vmem>>, vector<32x96xbf16>
    %cst = arith.constant dense<0.000000e+00> : vector<16x96xf32>
    %6 = tpu.matmul %4, %5, %cst {dimension_numbers = #tpu.dot_dimension_numbers<[1], [0], [0], [1], [0, 0, 1, 1], [], []>} : vector<16x32xbf16>, vector<32x96xbf16>, vector<16x96xf32> -> vector<16x96xf32>
    %7 = arith.addf %3, %6 : vector<16x96xf32>
    %c0_6 = arith.constant 0 : index
    %c0_7 = arith.constant 0 : index
    %8 = vector.load %arg7[%c0_6, %c0_7] : memref<16x96xf32, #tpu.memory_space<vmem>>, vector<16x96xf32>
    tpu.vector_store %arg7[%c0_6, %c0_7], %7 {strides = array<i32>} : memref<16x96xf32, #tpu.memory_space<vmem>>, vector<16x96xf32>,
    %c0_i32_8 = arith.constant 0 : i32
    %9 = arith.cmpi eq, %arg2, %c0_i32_8 : i32
    %10 = arith.extui %9 : i1 to i32
    %c0_i32_9 = arith.constant 0 : i32
    %11 = arith.cmpi ne, %10, %c0_i32_9 : i32
    scf.if %11 {
      %c0_10 = arith.constant 0 : index
      %c0_11 = arith.constant 0 : index
      %12 = vector.load %arg7[%c0_10, %c0_11] : memref<16x96xf32, #tpu.memory_space<vmem>>, vector<16x96xf32>
      %c0_12 = arith.constant 0 : index
      %c0_13 = arith.constant 0 : index
      %13 = vector.load %arg5[%c0_12, %c0_13] : memref<1x96xf32, #tpu.memory_space<vmem>>, vector<1x96xf32>
      %14 = vector.broadcast %13 : vector<1x96xf32> to vector<16x96xf32>
      %15 = arith.addf %12, %14 : vector<16x96xf32>
      %16 = arith.truncf %15 : vector<16x96xf32> to vector<16x96xbf16>
      %c0_14 = arith.constant 0 : index
      %c0_15 = arith.constant 0 : index
      %17 = vector.load %arg6[%c0_14, %c0_15] : memref<16x96xbf16, #tpu.memory_space<vmem>>, vector<16x96xbf16>
      tpu.vector_store %arg6[%c0_14, %c0_15], %16 {strides = array<i32>} : memref<16x96xbf16, #tpu.memory_space<vmem>>, vector<16x96xbf16>,
    } else {
    }
    return
  }
  func.func @transform_0(%arg0: i32, %arg1: i32, %arg2: i32) -> (i32, i32) {
    %c0_i32 = arith.constant 0 : i32
    return %arg0, %arg2 : i32, i32
  }
  func.func @transform_1(%arg0: i32, %arg1: i32, %arg2: i32) -> (i32, i32) {
    %c0_i32 = arith.constant 0 : i32
    return %arg2, %arg1 : i32, i32
  }
  func.func @transform_2(%arg0: i32, %arg1: i32, %arg2: i32) -> (i32, i32) {
    %c0_i32 = arith.constant 0 : i32
    %c0_i32_0 = arith.constant 0 : i32
    return %c0_i32, %arg1 : i32, i32
  }
  func.func @transform_3(%arg0: i32, %arg1: i32, %arg2: i32) -> (i32, i32) {
    %c0_i32 = arith.constant 0 : i32
    return %arg0, %arg1 : i32, i32
  }
}

</mosaic_0001>

<llo_original>
// kernel: tpu_custom_call.1
$region0: #{tpu_custom_call.1}
  #allocation0 [shape = 'u32[]', space=smem, size = 0x4, offset = 0x4, fixed_abs, tag = 'smem constant byte address 0x4 - core index']
  #allocation1 [shape = 'u32[72,128]{1,0:T(1,128)}', space=vmem, size = 0x9000, scoped, tag = 'internal scratch']
  #allocation2 [shape = 'f32[16,96]{1,0:T(8,128)}', space=vmem, size = 0x2000, scoped, tag = 'scratch operand']
  %s0 = inlined_call_operand.hbm [shape: bf16[16,32], index: 0, kind: input, shape index: {}]
  %s1 = inlined_call_operand.hbm [shape: bf16[32,96], index: 1, kind: input, shape index: {}]
  %s2 = inlined_call_operand.vmem [shape: f32[1,96], index: 2, kind: input, shape index: {}]
  %s3 = inlined_call_operand.hbm [shape: bf16[16,96], index: 3, kind: output, shape index: {}]
  %s4 = sld [smem:[#allocation0]]
  $region38: #{tpu_custom_call.1} parent=0
    _
  %s6 = ssub.s32 1, %s4
  %s7 = scalar_select 0, %s6, %s4
  $region1: #{tpu_custom_call.1} parent=0
    #allocation3 [shape = 'u8[4096]{0}', space=vmem, size = 0x1000, scoped, tag = 'input window, operand 0, single buffered']
    #allocation4 [shape = 's32[1]{0}', space=sflag, size = 0x4, scoped, tag = 'scoped memory for tpu_custom_call.1']
    #allocation5 [shape = 's32[1]{0}', space=sflag, size = 0x4, scoped, tag = 'scoped memory for tpu_custom_call.1']
    #allocation6 [shape = 'u8[8192]{0}', space=vmem, size = 0x2000, scoped, tag = 'input window, operand 1, single buffered']
    #allocation7 [shape = 's32[1]{0}', space=sflag, size = 0x4, scoped, tag = 'scoped memory for tpu_custom_call.1']
    #allocation8 [shape = 'u8[4096]{0}', space=vmem, size = 0x1000, scoped, tag = 'output window, operand 0, single buffered']
    %8 = vsyncpa [#allocation4], 0
    %9 = vsyncpa [#allocation7], 0
    %10 = vsyncpa [#allocation5], 0
    // Predicated region
    $region2: #{tpu_custom_call.1} parent=1 // pred_check
      _
    $region3: #{tpu_custom_call.1} parent=1 // pred_check_branch
      %12 = sbr.rel (0) target = $region5
    $region4: #{tpu_custom_call.1} parent=1 // pred_region
      %14 = vsyncadd [#allocation4], 0
      %s15 = sshll.u32 %s0, 4
      %s16 = int_to_ptr.hbm [resolvable:$true] %s15
      %s17 = sshll.u32 [#allocation3], 4
      %s18 = int_to_ptr.vmem [resolvable:$true] %s17
      %23 = dma.hbm_to_vmem [thread:$0]  %s16, 128, %s18, [#allocation4], 64, 64, 4
    $region5: #{tpu_custom_call.1} parent=1 // pred_fallthru
      _
    // Predicated region
    $region6: #{tpu_custom_call.1} parent=1 // pred_check
      _
    $region7: #{tpu_custom_call.1} parent=1 // pred_check_branch
      %25 = sbr.rel (0) target = $region9
    $region8: #{tpu_custom_call.1} parent=1 // pred_region
      %27 = vsyncadd [#allocation7], 0
      %s28 = sshll.u32 %s1, 4
      %s29 = int_to_ptr.hbm [resolvable:$true] %s28
      %s30 = sshll.u32 [#allocation6], 4
      %s31 = int_to_ptr.vmem [resolvable:$true] %s30
      %36 = dma.hbm_to_vmem [thread:$0]  %s29, 256, %s31, [#allocation7], 64, 64, 4
    $region9: #{tpu_custom_call.1} parent=1 // pred_fallthru
      _
    // Predicated region
    $region10: #{tpu_custom_call.1} parent=1 // pred_check
      _
    $region11: #{tpu_custom_call.1} parent=1 // pred_check_branch
      %38 = sbr.rel (0) target = $region13
    $region12: #{tpu_custom_call.1} parent=1 // pred_region
      _
    $region13: #{tpu_custom_call.1} parent=1 // pred_fallthru
      _
    // Predicated region
    $region14: #{tpu_custom_call.1} parent=1 // pred_check
      _
    $region15: #{tpu_custom_call.1} parent=1 // pred_check_branch
      %40 = sbr.rel (0) target = $region17
    $region16: #{tpu_custom_call.1} parent=1 // pred_region
      %42 = dma.done [#allocation4], 128
    $region17: #{tpu_custom_call.1} parent=1 // pred_fallthru
      _
    // Predicated region
    $region18: #{tpu_custom_call.1} parent=1 // pred_check
      _
    $region19: #{tpu_custom_call.1} parent=1 // pred_check_branch
      %44 = sbr.rel (0) target = $region21
    $region20: #{tpu_custom_call.1} parent=1 // pred_region
      %46 = dma.done [#allocation7], 256
    $region21: #{tpu_custom_call.1} parent=1 // pred_fallthru
      _
    %p48 = scmp.eq.s32.totalorder 0, 0
    // Predicated region
    $region22: #{tpu_custom_call.1} parent=1 // pred_check
      %p49 = pneg %p48
    $region23: #{tpu_custom_call.1} parent=1 // pred_check_branch
      %51 = sbr.rel (%p49) target = $region25
    $region24: #{tpu_custom_call.1} parent=1 // pred_region
      %vm52 = vcmask 785408
      %53 = vst.msk [vmem:[#allocation2] sm:$0xff] %vm52, 0.0
      %54 = vst.msk [vmem:[#allocation2 + $0x8] sm:$0xff] %vm52, 0.0
    $region25: #{tpu_custom_call.1} parent=1 // pred_fallthru
      _
    %v55 = vld [vmem:[#allocation2] sm:$0xff]
    %v56 = vld [vmem:[#allocation2 + $0x8] sm:$0xff]
    %v57 = vld [vmem:[#allocation3] sm:$0xf]
    %v58 = vld [vmem:[#allocation3 + $0x4] sm:$0xf]
    %v59 = vld [vmem:[#allocation6] sm:$0xf]
    %v60 = vld [vmem:[#allocation6 + $0x4] sm:$0xf]
    %v61 = vld [vmem:[#allocation6 + $0x8] sm:$0xf]
    %v62 = vld [vmem:[#allocation6 + $0xc] sm:$0xf]
    %v65 = vunpack.c.l.b16 %v57
    %v66 = vunpack.c.l.b16 %v58
    %v67 = vpack.c.b16 %v66, %v65
    %v72 = vunpack.c.l.b16 %v59
    %v73 = vunpack.c.l.b16 %v60
    %v74 = vunpack.c.l.b16 %v61
    %v75 = vunpack.c.l.b16 %v62
    %v76 = vpack.c.b16 %v73, %v72
    %v77 = vpack.c.b16 %v75, %v74
    %vm80 = vcmask 261120
    %v82 = vsel %vm80, %v67, 0
    %84 = vmatpush.bf16.msra.mxu0 0
    %85 = vmatpush.bf16.msra.mxu0 0
    %86 = vmatpush.bf16.msra.mxu0 0
    %87 = vmatpush.bf16.msra.mxu0 0
    %88 = vmatpush.bf16.msra.mxu0 0
    %89 = vmatpush.bf16.msra.mxu0 0
    %90 = vmatpush.bf16.msra.mxu0 %v77
    %91 = vmatpush.bf16.msra.mxu0 %v76
    %92 = vmatmul.bf16.gmra.mxu0 %v82
    %v93 = vpop.f32.mrf.mxu0
    %v94 = vadd.f32 0.0, %v93
    %v95 = vpop.f32.mrf.mxu0
    %v96 = vadd.f32 0.0, %v95
    %97 = vdwg.mxu0
    %v98 = vadd.f32 %v55, %v94
    %v99 = vadd.f32 %v56, %v96
    %vm100 = vcmask 785408
    %101 = vst.msk [vmem:[#allocation2] sm:$0xff] %vm100, %v98
    %102 = vst.msk [vmem:[#allocation2 + $0x8] sm:$0xff] %vm100, %v99
    // Predicated region
    $region26: #{tpu_custom_call.1} parent=1 // pred_check
      %p103 = pneg %p48
    $region27: #{tpu_custom_call.1} parent=1 // pred_check_branch
      %105 = sbr.rel (%p103) target = $region29
    $region28: #{tpu_custom_call.1} parent=1 // pred_region
      %v106 = vld [vmem:[#allocation2] sm:$0xff]
      %v107 = vld [vmem:[#allocation2 + $0x8] sm:$0xff]
      %v108 = vld [vmem:[%s2] sm:$0x1]
      %v110 = vperm.slane %v108, 0
      %v112 = vadd.f32 %v106, %v110
      %v113 = vadd.f32 %v107, %v110
      %v114 = vpack.c.bf16 %v112, %v112
      %v115 = vpack.c.bf16 %v113, %v113
      %vm116 = vcmask 781312
      %117 = vst.msk [vmem:[#allocation8] sm:$0xf] %vm116, %v114
      %118 = vst.msk [vmem:[#allocation8 + $0x4] sm:$0xf] %vm116, %v115
    $region29: #{tpu_custom_call.1} parent=1 // pred_fallthru
      _
    // Predicated region
    $region30: #{tpu_custom_call.1} parent=1 // pred_check
      _
    $region31: #{tpu_custom_call.1} parent=1 // pred_check_branch
      %120 = sbr.rel (0) target = $region33
    $region32: #{tpu_custom_call.1} parent=1 // pred_region
      %122 = vsyncadd [#allocation5], 0
      %s123 = sshll.u32 [#allocation8], 4
      %s124 = int_to_ptr.vmem [resolvable:$true] %s123
      %s125 = sshll.u32 %s3, 4
      %s126 = int_to_ptr.hbm [resolvable:$true] %s125
      %131 = dma.vmem_to_hbm [thread:$0]  %s124, 128, %s126, [#allocation5], 64, 64, 4
    $region33: #{tpu_custom_call.1} parent=1 // pred_fallthru
      _
    // Predicated region
    $region34: #{tpu_custom_call.1} parent=1 // pred_check
      _
    $region35: #{tpu_custom_call.1} parent=1 // pred_check_branch
      %133 = sbr.rel (0) target = $region37
    $region36: #{tpu_custom_call.1} parent=1 // pred_region
      %135 = dma.done [#allocation5], 128
    $region37: #{tpu_custom_call.1} parent=1 // pred_fallthru
      _
    %136 = vsyncpa [#allocation4], 1
    %137 = vsyncpa [#allocation7], 1
    %138 = vsyncpa [#allocation5], 1

</llo_original>
